<compile_context>
chip_gen: v7x
topology: tpu7x:2x2x1
jax: 0.10.0
libtpu: 0.0.40
codegen_flags: <defaults>
</compile_context>

<pallas_src>
import functools

import jax
import jax.numpy as jnp
from jax.experimental import pallas as pl
from jax.experimental.pallas import tpu as pltpu

BN_EPS = 1e-5


def _hswish(z):
    # h_swish(z) = z * relu6(z + 3) / 6
    return z * (jnp.clip(z + 3.0, 0.0, 6.0) * (1.0 / 6.0))


def _coord_att_kernel(h, w,
                      x_ref, w1_ref, b1_ref, wh_ref, bh_ref, ww_ref, bw_ref,
                      pool_ref, eh_ref, ew_ref, o_ref):
    x = x_ref[0]                                             # (c, h*w), lane-dense

    # Coordinate pooling via MXU: columns [0:h] of pool_ref average over W,
    # columns [h:h+w] average over H.
    x_hw = jnp.dot(x, pool_ref[...],
                   preferred_element_type=jnp.float32)       # (c, h+w)

    # conv1 (1x1 conv == channel matmul) with BN folded in, fused over both
    # branches, followed by a single h-swish pass.
    y = jnp.dot(w1_ref[...], x_hw,
                preferred_element_type=jnp.float32) + b1_ref[...]   # (mip, h+w)
    y = _hswish(y)

    yh = y[:, :h]                                            # (mip, h)
    yw = y[:, h:]                                            # (mip, w)

    a_h = jax.nn.sigmoid(
        jnp.dot(wh_ref[...], yh, preferred_element_type=jnp.float32)
        + bh_ref[...])                                       # (oup, h)
    a_w = jax.nn.sigmoid(
        jnp.dot(ww_ref[...], yw, preferred_element_type=jnp.float32)
        + bw_ref[...])                                       # (oup, w)

    # Expand gates to (oup, h*w) with 0/1 expansion matmuls so the final
    # multiply + store stay lane-dense (no in-kernel reshape of the slab).
    g = (jnp.dot(a_h, eh_ref[...], preferred_element_type=jnp.float32) *
         jnp.dot(a_w, ew_ref[...], preferred_element_type=jnp.float32))   # (oup, h*w)

    o_ref[0] = (x * g).astype(o_ref.dtype)


def coord_att(x, params):
    n, c, h, w = x.shape
    w1, b1, gamma, beta, mean, var, wh, bh, ww, bw = params
    mip = w1.shape[0]
    oup = wh.shape[0]
    assert oup == c, "CoordAtt gating requires oup == input channel count"
    hw = h * w
    itemsize = jnp.dtype(x.dtype).itemsize

    # --- Host-side prep (grid-invariant) -----------------------------------
    # Fold eval-mode BatchNorm into conv1.
    scale = gamma * jax.lax.rsqrt(var + BN_EPS)              # (mip, 1)
    w1f = (w1 * scale).astype(x.dtype)                       # (mip, c)
    b1f = (b1 * scale + (beta - mean * scale)).astype(x.dtype)   # (mip, 1)

    # Constant pooling / expansion matrices.
    idx = jnp.arange(hw, dtype=jnp.int32)
    row = idx // w
    col = idx % w
    e_h = (row[None, :] == jnp.arange(h, dtype=jnp.int32)[:, None]
           ).astype(x.dtype)                                 # (h, h*w)
    e_w = (col[None, :] == jnp.arange(w, dtype=jnp.int32)[:, None]
           ).astype(x.dtype)                                 # (w, h*w)
    pool = jnp.concatenate([e_h.T / w, e_w.T / h], axis=1)   # (h*w, h+w)

    # Wrapper-side reshape of contiguous NCHW is free; kernel sees (c, h*w).
    x_flat = x.reshape(n, c, hw)

    def full_spec(shape):
        return pl.BlockSpec(shape, lambda i, _nd=len(shape): (0,) * _nd)

    # VMEM budget: double-buffered in/out slabs + constants + headroom,
    # clamped to stay under v7x's 64 MiB physical VMEM.
    slab_bytes = c * hw * itemsize
    const_bytes = (mip * c + mip + 2 * oup * mip + 2 * oup
                   + 2 * hw * (h + w)) * itemsize
    vmem_limit = int(min(max(4 * slab_bytes + 2 * const_bytes + (4 << 20),
                             32 << 20),
                         60 << 20))

    # Advisory cost hint for XLA's scheduler (matmuls dominate).
    flops_per_n = (2 * c * hw * (h + w)          # coordinate pooling
                   + 2 * mip * c * (h + w)       # conv1
                   + 2 * oup * mip * (h + w)     # conv_h + conv_w
                   + 2 * oup * hw * (h + w)      # gate expansion
                   + 4 * c * hw)                 # h-swish + final multiply
    cost = pl.CostEstimate(
        flops=int(n * flops_per_n),
        transcendentals=int(n * oup * (h + w)),
        bytes_accessed=int(2 * n * c * hw * itemsize + const_bytes))

    out_flat = pl.pallas_call(
        functools.partial(_coord_att_kernel, h, w),
        out_shape=jax.ShapeDtypeStruct((n, c, hw), x.dtype),
        grid=(n,),
        in_specs=[
            pl.BlockSpec((1, c, hw), lambda i: (i, 0, 0)),   # x (flattened)
            full_spec((mip, c)),      # conv1 weight (BN folded)
            full_spec((mip, 1)),      # conv1 bias   (BN folded)
            full_spec((oup, mip)),    # conv_h weight
            full_spec((oup, 1)),      # conv_h bias
            full_spec((oup, mip)),    # conv_w weight
            full_spec((oup, 1)),      # conv_w bias
            full_spec((hw, h + w)),   # pooling matrix
            full_spec((h, hw)),       # H-gate expansion matrix
            full_spec((w, hw)),       # W-gate expansion matrix
        ],
        out_specs=pl.BlockSpec((1, c, hw), lambda i: (i, 0, 0)),
        compiler_params=pltpu.CompilerParams(
            dimension_semantics=("parallel",),
            vmem_limit_bytes=vmem_limit),
        cost_estimate=cost,
    )(x_flat, w1f, b1f, wh, bh, ww, bw, pool, e_h, e_w)

    return out_flat.reshape(n, c, h, w)


def coord_att_ref(x, params):
    """Pure-JAX reference mirroring the PyTorch forward exactly (eval-mode BN)."""
    w1, b1, gamma, beta, mean, var, wh, bh, ww, bw = params
    n, c, h, w = x.shape
    rs = lambda p: p.reshape(1, -1, 1, 1)
    x_h = jnp.mean(x, axis=3, keepdims=True)                     # (n,c,h,1)
    x_w = jnp.mean(x, axis=2, keepdims=True)                     # (n,c,1,w)
    x_w = jnp.transpose(x_w, (0, 1, 3, 2))                       # (n,c,w,1)
    y = jnp.concatenate([x_h, x_w], axis=2)                      # (n,c,h+w,1)
    y = jnp.einsum('oc,nclk->nolk', w1, y) + rs(b1)
    y = (y - rs(mean)) * (rs(gamma) / jnp.sqrt(rs(var) + BN_EPS)) + rs(beta)
    y = y * jnp.clip(y + 3.0, 0.0, 6.0) / 6.0
    xh, xw = y[:, :, :h, :], y[:, :, h:, :]
    xw = jnp.transpose(xw, (0, 1, 3, 2))
    a_h = jax.nn.sigmoid(jnp.einsum('om,nmlk->nolk', wh, xh) + rs(bh))
    a_w = jax.nn.sigmoid(jnp.einsum('om,nmlk->nolk', ww, xw) + rs(bw))
    return x * a_w * a_h


if __name__ == "__main__":
    n, c, h, w = 2, 4, 16, 16
    reduction = 32
    mip = max(8, c // reduction)   # = 8
    oup = c                        # output channels must broadcast with identity

    key = jax.random.PRNGKey(0)
    keys = jax.random.split(key, 11)
    x = jax.random.normal(keys[0], (n, c, h, w), jnp.float32)

    w1 = 0.3 * jax.random.normal(keys[1], (mip, c), jnp.float32)
    b1 = 0.1 * jax.random.normal(keys[2], (mip, 1), jnp.float32)
    gamma = 1.0 + 0.1 * jax.random.normal(keys[3], (mip, 1), jnp.float32)
    beta = 0.1 * jax.random.normal(keys[4], (mip, 1), jnp.float32)
    mean = 0.1 * jax.random.normal(keys[5], (mip, 1), jnp.float32)
    var = jnp.abs(jax.random.normal(keys[6], (mip, 1), jnp.float32)) + 0.5
    wh = 0.3 * jax.random.normal(keys[7], (oup, mip), jnp.float32)
    bh = 0.1 * jax.random.normal(keys[8], (oup, 1), jnp.float32)
    ww = 0.3 * jax.random.normal(keys[9], (oup, mip), jnp.float32)
    bw = 0.1 * jax.random.normal(keys[10], (oup, 1), jnp.float32)

    params = (w1, b1, gamma, beta, mean, var, wh, bh, ww, bw)

    out = coord_att(x, params)
    jax.block_until_ready(out)

    ref = coord_att_ref(x, params)
    assert out.shape == (n, c, h, w)
    max_err = float(jnp.max(jnp.abs(out - ref)))
    assert jnp.allclose(out, ref, atol=2e-5, rtol=2e-5), max_err

    print("KERNEL_OK")
</pallas_src>

<mosaic_0001>
module attributes {stable_mosaic.version = 11 : i64} {
  func.func @_coord_att_kernel(%arg0: i32, %arg1: memref<1x4x256xf32, #tpu.memory_space<vmem>>, %arg2: memref<8x4xf32, #tpu.memory_space<vmem>>, %arg3: memref<8x1xf32, #tpu.memory_space<vmem>>, %arg4: memref<4x8xf32, #tpu.memory_space<vmem>>, %arg5: memref<4x1xf32, #tpu.memory_space<vmem>>, %arg6: memref<4x8xf32, #tpu.memory_space<vmem>>, %arg7: memref<4x1xf32, #tpu.memory_space<vmem>>, %arg8: memref<256x32xf32, #tpu.memory_space<vmem>>, %arg9: memref<16x256xf32, #tpu.memory_space<vmem>>, %arg10: memref<16x256xf32, #tpu.memory_space<vmem>>, %arg11: memref<1x4x256xf32, #tpu.memory_space<vmem>>) attributes {dimension_semantics = [#tpu.dimension_semantics<parallel>], iteration_bounds = array<i64: 2>, scalar_prefetch = 0 : i64, scratch_operands = 0 : i64, tpu.core_type = #tpu.core_type<tc>, window_params = [{transform_indices = @transform_0, window_bounds = array<i64: 1, 4, 256>}, {pipeline_mode = #tpu.pipeline_mode<synchronous>, transform_indices = @transform_1, window_bounds = array<i64: 8, 4>}, {pipeline_mode = #tpu.pipeline_mode<synchronous>, transform_indices = @transform_2, window_bounds = array<i64: 8, 1>}, {pipeline_mode = #tpu.pipeline_mode<synchronous>, transform_indices = @transform_3, window_bounds = array<i64: 4, 8>}, {pipeline_mode = #tpu.pipeline_mode<synchronous>, transform_indices = @transform_4, window_bounds = array<i64: 4, 1>}, {pipeline_mode = #tpu.pipeline_mode<synchronous>, transform_indices = @transform_5, window_bounds = array<i64: 4, 8>}, {pipeline_mode = #tpu.pipeline_mode<synchronous>, transform_indices = @transform_6, window_bounds = array<i64: 4, 1>}, {pipeline_mode = #tpu.pipeline_mode<synchronous>, transform_indices = @transform_7, window_bounds = array<i64: 256, 32>}, {pipeline_mode = #tpu.pipeline_mode<synchronous>, transform_indices = @transform_8, window_bounds = array<i64: 16, 256>}, {pipeline_mode = #tpu.pipeline_mode<synchronous>, transform_indices = @transform_9, window_bounds = array<i64: 16, 256>}, {transform_indices = @transform_10, window_bounds = array<i64: 1, 4, 256>}]} {
    %c0 = arith.constant 0 : index
    %c0_0 = arith.constant 0 : index
    %c0_1 = arith.constant 0 : index
    %0 = vector.load %arg1[%c0, %c0_0, %c0_1] : memref<1x4x256xf32, #tpu.memory_space<vmem>>, vector<1x4x256xf32>
    %1 = vector.shape_cast %0 : vector<1x4x256xf32> to vector<4x256xf32>
    %c0_2 = arith.constant 0 : index
    %c0_3 = arith.constant 0 : index
    %2 = vector.load %arg8[%c0_2, %c0_3] : memref<256x32xf32, #tpu.memory_space<vmem>>, vector<256x32xf32>
    %cst = arith.constant dense<0.000000e+00> : vector<4x32xf32>
    %3 = tpu.matmul %1, %2, %cst {dimension_numbers = #tpu.dot_dimension_numbers<[1], [0], [0], [1], [0, 0, 1, 1], [], []>} : vector<4x256xf32>, vector<256x32xf32>, vector<4x32xf32> -> vector<4x32xf32>
    %c0_4 = arith.constant 0 : index
    %c0_5 = arith.constant 0 : index
    %4 = vector.load %arg2[%c0_4, %c0_5] : memref<8x4xf32, #tpu.memory_space<vmem>>, vector<8x4xf32>
    %cst_6 = arith.constant dense<0.000000e+00> : vector<8x32xf32>
    %5 = tpu.matmul %4, %3, %cst_6 {dimension_numbers = #tpu.dot_dimension_numbers<[1], [0], [0], [1], [0, 0, 1, 1], [], []>} : vector<8x4xf32>, vector<4x32xf32>, vector<8x32xf32> -> vector<8x32xf32>
    %c0_7 = arith.constant 0 : index
    %c0_8 = arith.constant 0 : index
    %6 = vector.load %arg3[%c0_7, %c0_8] : memref<8x1xf32, #tpu.memory_space<vmem>>, vector<8x1xf32>
    %7 = vector.broadcast %6 : vector<8x1xf32> to vector<8x32xf32>
    %8 = arith.addf %5, %7 : vector<8x32xf32>
    %cst_9 = arith.constant 3.000000e+00 : f32
    %9 = vector.broadcast %cst_9 : f32 to vector<8x32xf32>
    %10 = arith.addf %8, %9 : vector<8x32xf32>
    %cst_10 = arith.constant 0.000000e+00 : f32
    %cst_11 = arith.constant 6.000000e+00 : f32
    %11 = vector.broadcast %cst_10 : f32 to vector<8x32xf32>
    %12 = arith.maximumf %11, %10 : vector<8x32xf32>
    %13 = vector.broadcast %cst_11 : f32 to vector<8x32xf32>
    %14 = arith.minimumf %13, %12 : vector<8x32xf32>
    %cst_12 = arith.constant 0.166666672 : f32
    %15 = vector.broadcast %cst_12 : f32 to vector<8x32xf32>
    %16 = arith.mulf %14, %15 : vector<8x32xf32>
    %17 = arith.mulf %8, %16 : vector<8x32xf32>
    %18 = vector.extract_strided_slice %17 {offsets = [0, 0], sizes = [8, 16], strides = [1, 1]} : vector<8x32xf32> to vector<8x16xf32>
    %19 = vector.extract_strided_slice %17 {offsets = [0, 16], sizes = [8, 16], strides = [1, 1]} : vector<8x32xf32> to vector<8x16xf32>
    %c0_13 = arith.constant 0 : index
    %c0_14 = arith.constant 0 : index
    %20 = vector.load %arg4[%c0_13, %c0_14] : memref<4x8xf32, #tpu.memory_space<vmem>>, vector<4x8xf32>
    %cst_15 = arith.constant dense<0.000000e+00> : vector<4x16xf32>
    %21 = tpu.matmul %20, %18, %cst_15 {dimension_numbers = #tpu.dot_dimension_numbers<[1], [0], [0], [1], [0, 0, 1, 1], [], []>} : vector<4x8xf32>, vector<8x16xf32>, vector<4x16xf32> -> vector<4x16xf32>
    %c0_16 = arith.constant 0 : index
    %c0_17 = arith.constant 0 : index
    %22 = vector.load %arg5[%c0_16, %c0_17] : memref<4x1xf32, #tpu.memory_space<vmem>>, vector<4x1xf32>
    %23 = vector.broadcast %22 : vector<4x1xf32> to vector<4x16xf32>
    %24 = arith.addf %21, %23 : vector<4x16xf32>
    %25 = arith.negf %24 : vector<4x16xf32>
    %26 = math.exp %25 : vector<4x16xf32>
    %cst_18 = arith.constant 1.000000e+00 : f32
    %27 = vector.broadcast %cst_18 : f32 to vector<4x16xf32>
    %28 = arith.addf %27, %26 : vector<4x16xf32>
    %29 = arith.divf %27, %28 : vector<4x16xf32>
    %c0_19 = arith.constant 0 : index
    %c0_20 = arith.constant 0 : index
    %30 = vector.load %arg6[%c0_19, %c0_20] : memref<4x8xf32, #tpu.memory_space<vmem>>, vector<4x8xf32>
    %cst_21 = arith.constant dense<0.000000e+00> : vector<4x16xf32>
    %31 = tpu.matmul %30, %19, %cst_21 {dimension_numbers = #tpu.dot_dimension_numbers<[1], [0], [0], [1], [0, 0, 1, 1], [], []>} : vector<4x8xf32>, vector<8x16xf32>, vector<4x16xf32> -> vector<4x16xf32>
    %c0_22 = arith.constant 0 : index
    %c0_23 = arith.constant 0 : index
    %32 = vector.load %arg7[%c0_22, %c0_23] : memref<4x1xf32, #tpu.memory_space<vmem>>, vector<4x1xf32>
    %33 = vector.broadcast %32 : vector<4x1xf32> to vector<4x16xf32>
    %34 = arith.addf %31, %33 : vector<4x16xf32>
    %35 = arith.negf %34 : vector<4x16xf32>
    %36 = math.exp %35 : vector<4x16xf32>
    %cst_24 = arith.constant 1.000000e+00 : f32
    %37 = vector.broadcast %cst_24 : f32 to vector<4x16xf32>
    %38 = arith.addf %37, %36 : vector<4x16xf32>
    %39 = arith.divf %37, %38 : vector<4x16xf32>
    %c0_25 = arith.constant 0 : index
    %c0_26 = arith.constant 0 : index
    %40 = vector.load %arg9[%c0_25, %c0_26] : memref<16x256xf32, #tpu.memory_space<vmem>>, vector<16x256xf32>
    %cst_27 = arith.constant dense<0.000000e+00> : vector<4x256xf32>
    %41 = tpu.matmul %29, %40, %cst_27 {dimension_numbers = #tpu.dot_dimension_numbers<[1], [0], [0], [1], [0, 0, 1, 1], [], []>} : vector<4x16xf32>, vector<16x256xf32>, vector<4x256xf32> -> vector<4x256xf32>
    %c0_28 = arith.constant 0 : index
    %c0_29 = arith.constant 0 : index
    %42 = vector.load %arg10[%c0_28, %c0_29] : memref<16x256xf32, #tpu.memory_space<vmem>>, vector<16x256xf32>
    %cst_30 = arith.constant dense<0.000000e+00> : vector<4x256xf32>
    %43 = tpu.matmul %39, %42, %cst_30 {dimension_numbers = #tpu.dot_dimension_numbers<[1], [0], [0], [1], [0, 0, 1, 1], [], []>} : vector<4x16xf32>, vector<16x256xf32>, vector<4x256xf32> -> vector<4x256xf32>
    %44 = arith.mulf %41, %43 : vector<4x256xf32>
    %45 = arith.mulf %1, %44 : vector<4x256xf32>
    %c0_31 = arith.constant 0 : index
    %c0_32 = arith.constant 0 : index
    %c0_33 = arith.constant 0 : index
    %46 = vector.load %arg11[%c0_31, %c0_32, %c0_33] : memref<1x4x256xf32, #tpu.memory_space<vmem>>, vector<1x4x256xf32>
    %47 = vector.shape_cast %46 : vector<1x4x256xf32> to vector<4x256xf32>
    %48 = vector.shape_cast %45 : vector<4x256xf32> to vector<1x4x256xf32>
    tpu.vector_store %arg11[%c0_31, %c0_32, %c0_33], %48 {strides = array<i32>} : memref<1x4x256xf32, #tpu.memory_space<vmem>>, vector<1x4x256xf32>,
    return
  }
  func.func @transform_0(%arg0: i32) -> (i32, i32, i32) {
    %c0_i32 = arith.constant 0 : i32
    %c0_i32_0 = arith.constant 0 : i32
    %c0_i32_1 = arith.constant 0 : i32
    return %arg0, %c0_i32, %c0_i32_0 : i32, i32, i32
  }
  func.func @transform_1(%arg0: i32) -> (i32, i32) {
    %c0_i32 = arith.constant 0 : i32
    %c0_i32_0 = arith.constant 0 : i32
    %c0_i32_1 = arith.constant 0 : i32
    return %c0_i32, %c0_i32_0 : i32, i32
  }
  func.func @transform_2(%arg0: i32) -> (i32, i32) {
    %c0_i32 = arith.constant 0 : i32
    %c0_i32_0 = arith.constant 0 : i32
    %c0_i32_1 = arith.constant 0 : i32
    return %c0_i32, %c0_i32_0 : i32, i32
  }
  func.func @transform_3(%arg0: i32) -> (i32, i32) {
    %c0_i32 = arith.constant 0 : i32
    %c0_i32_0 = arith.constant 0 : i32
    %c0_i32_1 = arith.constant 0 : i32
    return %c0_i32, %c0_i32_0 : i32, i32
  }
  func.func @transform_4(%arg0: i32) -> (i32, i32) {
    %c0_i32 = arith.constant 0 : i32
    %c0_i32_0 = arith.constant 0 : i32
    %c0_i32_1 = arith.constant 0 : i32
    return %c0_i32, %c0_i32_0 : i32, i32
  }
  func.func @transform_5(%arg0: i32) -> (i32, i32) {
    %c0_i32 = arith.constant 0 : i32
    %c0_i32_0 = arith.constant 0 : i32
    %c0_i32_1 = arith.constant 0 : i32
    return %c0_i32, %c0_i32_0 : i32, i32
  }
  func.func @transform_6(%arg0: i32) -> (i32, i32) {
    %c0_i32 = arith.constant 0 : i32
    %c0_i32_0 = arith.constant 0 : i32
    %c0_i32_1 = arith.constant 0 : i32
    return %c0_i32, %c0_i32_0 : i32, i32
  }
  func.func @transform_7(%arg0: i32) -> (i32, i32) {
    %c0_i32 = arith.constant 0 : i32
    %c0_i32_0 = arith.constant 0 : i32
    %c0_i32_1 = arith.constant 0 : i32
    return %c0_i32, %c0_i32_0 : i32, i32
  }
  func.func @transform_8(%arg0: i32) -> (i32, i32) {
    %c0_i32 = arith.constant 0 : i32
    %c0_i32_0 = arith.constant 0 : i32
    %c0_i32_1 = arith.constant 0 : i32
    return %c0_i32, %c0_i32_0 : i32, i32
  }
  func.func @transform_9(%arg0: i32) -> (i32, i32) {
    %c0_i32 = arith.constant 0 : i32
    %c0_i32_0 = arith.constant 0 : i32
    %c0_i32_1 = arith.constant 0 : i32
    return %c0_i32, %c0_i32_0 : i32, i32
  }
  func.func @transform_10(%arg0: i32) -> (i32, i32, i32) {
    %c0_i32 = arith.constant 0 : i32
    %c0_i32_0 = arith.constant 0 : i32
    %c0_i32_1 = arith.constant 0 : i32
    return %arg0, %c0_i32, %c0_i32_0 : i32, i32, i32
  }
}

</mosaic_0001>

<llo_original>
// kernel: tpu_custom_call.1
$region0: #{tpu_custom_call.1}
  #allocation0 [shape = 'u32[]', space=smem, size = 0x4, offset = 0x4, fixed_abs, tag = 'smem constant byte address 0x4 - core index']
  #allocation1 [shape = 'u32[144,128]{1,0:T(1,128)}', space=vmem, size = 0x12000, scoped, tag = 'internal scratch']
  %s0 = inlined_call_operand.vmem [shape: f32[2,4,256], index: 0, kind: input, shape index: {}]
  %s1 = inlined_call_operand.vmem [shape: f32[8,4], index: 1, kind: input, shape index: {}]
  %s2 = inlined_call_operand.vmem [shape: f32[8,1], index: 2, kind: input, shape index: {}]
  %s3 = inlined_call_operand.vmem [shape: f32[4,8], index: 3, kind: input, shape index: {}]
  %s4 = inlined_call_operand.vmem [shape: f32[4,1], index: 4, kind: input, shape index: {}]
  %s5 = inlined_call_operand.vmem [shape: f32[4,8], index: 5, kind: input, shape index: {}]
  %s6 = inlined_call_operand.vmem [shape: f32[4,1], index: 6, kind: input, shape index: {}]
  %s7 = inlined_call_operand.vmem [shape: f32[256,32], index: 7, kind: input, shape index: {}]
  %s8 = inlined_call_operand.vmem [shape: f32[16,256], index: 8, kind: input, shape index: {}]
  %s9 = inlined_call_operand.vmem [shape: f32[16,256], index: 9, kind: input, shape index: {}]
  %s10 = inlined_call_operand.hbm [shape: f32[2,4,256], index: 10, kind: output, shape index: {}]
  %s11 = sld [smem:[#allocation0]]
  $region73: #{tpu_custom_call.1} parent=0
    _
  %s13 = ssub.s32 1, %s11
  %s14 = scalar_select 0, %s13, %s11
  $region1: #{tpu_custom_call.1} parent=0
    #allocation2 [shape = 'u8[8192]{0}', space=vmem, size = 0x2000, scoped, tag = 'output window, operand 0']
    #allocation3 [shape = 's32[2]{0}', space=sflag, size = 0x8, scoped, tag = 'scoped memory for tpu_custom_call.1']
    %15 = vsyncpa [#allocation3], 0
    %s16 = scalar_lea.sflag [#allocation3], 1
    %17 = vsyncpa %s16, 0
    loop: start=0, step=1, limit=4
    $region2: #{tpu_custom_call.1} parent=1 // loop_pre_header
      _
    $region3: #{tpu_custom_call.1} parent=1 // loop_header
      %s19 = sphi 0, %s23
      %p20 = scmp.ge.s32.totalorder %s19, 4
      %s29 = sphi 0, %s31
      %s32 = sphi 0, %s29
      %s33 = sphi 0, %s32
      %s49 = sphi 0, %s33
      %s53 = sphi 0, %s53
      %s55 = sphi 0, %s53
      %s56 = sphi 0, %s55
      %s70 = sphi 0, %s56
      %s74 = sphi 0, %s74
      %s76 = sphi 0, %s74
      %s77 = sphi 0, %s76
      %s91 = sphi 0, %s77
      %s95 = sphi 0, %s95
      %s97 = sphi 0, %s95
      %s98 = sphi 0, %s97
      %s112 = sphi 0, %s98
      %s116 = sphi 0, %s116
      %s118 = sphi 0, %s116
      %s119 = sphi 0, %s118
      %s133 = sphi 0, %s119
      %s137 = sphi 0, %s137
      %s139 = sphi 0, %s137
      %s140 = sphi 0, %s139
      %s154 = sphi 0, %s140
      %s158 = sphi 0, %s158
      %s160 = sphi 0, %s158
      %s161 = sphi 0, %s160
      %s175 = sphi 0, %s161
      %s179 = sphi 0, %s179
      %s181 = sphi 0, %s179
      %s182 = sphi 0, %s181
      %s196 = sphi 0, %s182
      %s200 = sphi 0, %s200
      %s202 = sphi 0, %s200
      %s203 = sphi 0, %s202
      %s217 = sphi 0, %s203
      %s221 = sphi 0, %s221
      %s223 = sphi 0, %s221
      %s224 = sphi 0, %s223
      %s238 = sphi 0, %s224
      %s244 = sphi 0, %s246
      %s247 = sphi 0, %s244
      %s248 = sphi 0, %s247
      %s264 = sphi 0, %s248
    $region4: #{tpu_custom_call.1} parent=1 // loop_header_branch
      %22 = sbr.rel (%p20) target = $region8
    $region5: #{tpu_custom_call.1} parent=1 // loop_body
      %s24 = ssub.s32 %s19, 1
      %s25 = ssub.s32 %s19, 2
      %s26 = sadd.s32 %s19, 1
      %s27 = ssub.s32 %s19, %s26
      %p28 = scmp.eq.s32.totalorder %s27, 0
      %s30 = sadd.s32 %s29, 1
      %s31 = scalar_select %p28, %s29, %s30
      %p34 = pneg %p28
      %p35 = scmp.eq.s32.totalorder %s19, 1
      %p36 = por %p34, %p35
      %p37 = scmp.ne.s32.totalorder %s29, %s32
      %p38 = scmp.eq.s32.totalorder %s19, 0
      %p39 = por %p37, %p38
      %p40 = scmp.ne.s32.totalorder %s29, %s32
      %p41 = scmp.eq.s32.totalorder %s24, 1
      %p42 = por %p40, %p41
      %p43 = scmp.ne.s32.totalorder %s32, %s33
      %p44 = scmp.eq.s32.totalorder %s24, 0
      %p45 = por %p43, %p44
      %p46 = scmp.ne.s32.totalorder %s32, %s33
      %p47 = scmp.eq.s32.totalorder %s25, 1
      %p48 = por %p46, %p47
      %p50 = scmp.ne.s32.totalorder %s33, %s49
      %p51 = scmp.eq.s32.totalorder %s25, 0
      %p52 = por %p50, %p51
      %s54 = sadd.s32 %s53, 1
      %p57 = scmp.eq.s32.totalorder %s19, 1
      %p58 = scmp.ne.s32.totalorder %s53, %s55
      %p59 = scmp.eq.s32.totalorder %s19, 0
      %p60 = por %p58, %p59
      %p61 = scmp.ne.s32.totalorder %s53, %s55
      %p62 = scmp.eq.s32.totalorder %s24, 1
      %p63 = por %p61, %p62
      %p64 = scmp.ne.s32.totalorder %s55, %s56
      %p65 = scmp.eq.s32.totalorder %s24, 0
      %p66 = por %p64, %p65
      %p67 = scmp.ne.s32.totalorder %s55, %s56
      %p68 = scmp.eq.s32.totalorder %s25, 1
      %p69 = por %p67, %p68
      %p71 = scmp.ne.s32.totalorder %s56, %s70
      %p72 = scmp.eq.s32.totalorder %s25, 0
      %p73 = por %p71, %p72
      %s75 = sadd.s32 %s74, 1
      %p78 = scmp.eq.s32.totalorder %s19, 1
      %p79 = scmp.ne.s32.totalorder %s74, %s76
      %p80 = scmp.eq.s32.totalorder %s19, 0
      %p81 = por %p79, %p80
      %p82 = scmp.ne.s32.totalorder %s74, %s76
      %p83 = scmp.eq.s32.totalorder %s24, 1
      %p84 = por %p82, %p83
      %p85 = scmp.ne.s32.totalorder %s76, %s77
      %p86 = scmp.eq.s32.totalorder %s24, 0
      %p87 = por %p85, %p86
      %p88 = scmp.ne.s32.totalorder %s76, %s77
      %p89 = scmp.eq.s32.totalorder %s25, 1
      %p90 = por %p88, %p89
      %p92 = scmp.ne.s32.totalorder %s77, %s91
      %p93 = scmp.eq.s32.totalorder %s25, 0
      %p94 = por %p92, %p93
      %s96 = sadd.s32 %s95, 1
      %p99 = scmp.eq.s32.totalorder %s19, 1
      %p100 = scmp.ne.s32.totalorder %s95, %s97
      %p101 = scmp.eq.s32.totalorder %s19, 0
      %p102 = por %p100, %p101
      %p103 = scmp.ne.s32.totalorder %s95, %s97
      %p104 = scmp.eq.s32.totalorder %s24, 1
      %p105 = por %p103, %p104
      %p106 = scmp.ne.s32.totalorder %s97, %s98
      %p107 = scmp.eq.s32.totalorder %s24, 0
      %p108 = por %p106, %p107
      %p109 = scmp.ne.s32.totalorder %s97, %s98
      %p110 = scmp.eq.s32.totalorder %s25, 1
      %p111 = por %p109, %p110
      %p113 = scmp.ne.s32.totalorder %s98, %s112
      %p114 = scmp.eq.s32.totalorder %s25, 0
      %p115 = por %p113, %p114
      %s117 = sadd.s32 %s116, 1
      %p120 = scmp.eq.s32.totalorder %s19, 1
      %p121 = scmp.ne.s32.totalorder %s116, %s118
      %p122 = scmp.eq.s32.totalorder %s19, 0
      %p123 = por %p121, %p122
      %p124 = scmp.ne.s32.totalorder %s116, %s118
      %p125 = scmp.eq.s32.totalorder %s24, 1
      %p126 = por %p124, %p125
      %p127 = scmp.ne.s32.totalorder %s118, %s119
      %p128 = scmp.eq.s32.totalorder %s24, 0
      %p129 = por %p127, %p128
      %p130 = scmp.ne.s32.totalorder %s118, %s119
      %p131 = scmp.eq.s32.totalorder %s25, 1
      %p132 = por %p130, %p131
      %p134 = scmp.ne.s32.totalorder %s119, %s133
      %p135 = scmp.eq.s32.totalorder %s25, 0
      %p136 = por %p134, %p135
      %s138 = sadd.s32 %s137, 1
      %p141 = scmp.eq.s32.totalorder %s19, 1
      %p142 = scmp.ne.s32.totalorder %s137, %s139
      %p143 = scmp.eq.s32.totalorder %s19, 0
      %p144 = por %p142, %p143
      %p145 = scmp.ne.s32.totalorder %s137, %s139
      %p146 = scmp.eq.s32.totalorder %s24, 1
      %p147 = por %p145, %p146
      %p148 = scmp.ne.s32.totalorder %s139, %s140
      %p149 = scmp.eq.s32.totalorder %s24, 0
      %p150 = por %p148, %p149
      %p151 = scmp.ne.s32.totalorder %s139, %s140
      %p152 = scmp.eq.s32.totalorder %s25, 1
      %p153 = por %p151, %p152
      %p155 = scmp.ne.s32.totalorder %s140, %s154
      %p156 = scmp.eq.s32.totalorder %s25, 0
      %p157 = por %p155, %p156
      %s159 = sadd.s32 %s158, 1
      %p162 = scmp.eq.s32.totalorder %s19, 1
      %p163 = scmp.ne.s32.totalorder %s158, %s160
      %p164 = scmp.eq.s32.totalorder %s19, 0
      %p165 = por %p163, %p164
      %p166 = scmp.ne.s32.totalorder %s158, %s160
      %p167 = scmp.eq.s32.totalorder %s24, 1
      %p168 = por %p166, %p167
      %p169 = scmp.ne.s32.totalorder %s160, %s161
      %p170 = scmp.eq.s32.totalorder %s24, 0
      %p171 = por %p169, %p170
      %p172 = scmp.ne.s32.totalorder %s160, %s161
      %p173 = scmp.eq.s32.totalorder %s25, 1
      %p174 = por %p172, %p173
      %p176 = scmp.ne.s32.totalorder %s161, %s175
      %p177 = scmp.eq.s32.totalorder %s25, 0
      %p178 = por %p176, %p177
      %s180 = sadd.s32 %s179, 1
      %p183 = scmp.eq.s32.totalorder %s19, 1
      %p184 = scmp.ne.s32.totalorder %s179, %s181
      %p185 = scmp.eq.s32.totalorder %s19, 0
      %p186 = por %p184, %p185
      %p187 = scmp.ne.s32.totalorder %s179, %s181
      %p188 = scmp.eq.s32.totalorder %s24, 1
      %p189 = por %p187, %p188
      %p190 = scmp.ne.s32.totalorder %s181, %s182
      %p191 = scmp.eq.s32.totalorder %s24, 0
      %p192 = por %p190, %p191
      %p193 = scmp.ne.s32.totalorder %s181, %s182
      %p194 = scmp.eq.s32.totalorder %s25, 1
      %p195 = por %p193, %p194
      %p197 = scmp.ne.s32.totalorder %s182, %s196
      %p198 = scmp.eq.s32.totalorder %s25, 0
      %p199 = por %p197, %p198
      %s201 = sadd.s32 %s200, 1
      %p204 = scmp.eq.s32.totalorder %s19, 1
      %p205 = scmp.ne.s32.totalorder %s200, %s202
      %p206 = scmp.eq.s32.totalorder %s19, 0
      %p207 = por %p205, %p206
      %p208 = scmp.ne.s32.totalorder %s200, %s202
      %p209 = scmp.eq.s32.totalorder %s24, 1
      %p210 = por %p208, %p209
      %p211 = scmp.ne.s32.totalorder %s202, %s203
      %p212 = scmp.eq.s32.totalorder %s24, 0
      %p213 = por %p211, %p212
      %p214 = scmp.ne.s32.totalorder %s202, %s203
      %p215 = scmp.eq.s32.totalorder %s25, 1
      %p216 = por %p214, %p215
      %p218 = scmp.ne.s32.totalorder %s203, %s217
      %p219 = scmp.eq.s32.totalorder %s25, 0
      %p220 = por %p218, %p219
      %s222 = sadd.s32 %s221, 1
      %p225 = scmp.eq.s32.totalorder %s19, 1
      %p226 = scmp.ne.s32.totalorder %s221, %s223
      %p227 = scmp.eq.s32.totalorder %s19, 0
      %p228 = por %p226, %p227
      %p229 = scmp.ne.s32.totalorder %s221, %s223
      %p230 = scmp.eq.s32.totalorder %s24, 1
      %p231 = por %p229, %p230
      %p232 = scmp.ne.s32.totalorder %s223, %s224
      %p233 = scmp.eq.s32.totalorder %s24, 0
      %p234 = por %p232, %p233
      %p235 = scmp.ne.s32.totalorder %s223, %s224
      %p236 = scmp.eq.s32.totalorder %s25, 1
      %p237 = por %p235, %p236
      %p239 = scmp.ne.s32.totalorder %s224, %s238
      %p240 = scmp.eq.s32.totalorder %s25, 0
      %p241 = por %p239, %p240
      %s242 = ssub.s32 %s19, %s26
      %p243 = scmp.eq.s32.totalorder %s242, 0
      %s245 = sadd.s32 %s244, 1
      %s246 = scalar_select %p243, %s244, %s245
      %p249 = pneg %p243
      %p250 = scmp.eq.s32.totalorder %s19, 1
      %p251 = por %p249, %p250
      %p252 = scmp.ne.s32.totalorder %s244, %s247
      %p253 = scmp.eq.s32.totalorder %s19, 0
      %p254 = por %p252, %p253
      %p255 = scmp.ne.s32.totalorder %s244, %s247
      %p256 = scmp.eq.s32.totalorder %s24, 1
      %p257 = por %p255, %p256
      %p258 = scmp.ne.s32.totalorder %s247, %s248
      %p259 = scmp.eq.s32.totalorder %s24, 0
      %p260 = por %p258, %p259
      %p261 = scmp.ne.s32.totalorder %s247, %s248
      %p262 = scmp.eq.s32.totalorder %s25, 1
      %p263 = por %p261, %p262
      %p265 = scmp.ne.s32.totalorder %s248, %s264
      %p266 = scmp.eq.s32.totalorder %s25, 0
      %p267 = por %p265, %p266
      %p268 = scmp.le.s32.totalorder 1, %s19
      %p269 = scmp.lt.s32.totalorder %s19, 3
      %p270 = pnand %p268, %p269
      %p271 = pneg %p270
      // Predicated region
      $region9: #{tpu_custom_call.1} parent=5 // pred_check
        _
      $region10: #{tpu_custom_call.1} parent=5 // pred_check_branch
        %273 = sbr.rel (%p270) target = $region12
      $region11: #{tpu_custom_call.1} parent=5 // pred_region
        %s274 = ssub.s32 %s19, 1
        // Predicated region
        $region13: #{tpu_custom_call.1} parent=11 // pred_check
          %p275 = pneg %p66
        $region14: #{tpu_custom_call.1} parent=11 // pred_check_branch
          %277 = sbr.rel (%p275) target = $region16
        $region15: #{tpu_custom_call.1} parent=11 // pred_region
          _
        $region16: #{tpu_custom_call.1} parent=11 // pred_fallthru
          _
        // Predicated region
        $region17: #{tpu_custom_call.1} parent=11 // pred_check
          %p278 = pneg %p87
        $region18: #{tpu_custom_call.1} parent=11 // pred_check_branch
          %280 = sbr.rel (%p278) target = $region20
        $region19: #{tpu_custom_call.1} parent=11 // pred_region
          _
        $region20: #{tpu_custom_call.1} parent=11 // pred_fallthru
          _
        // Predicated region
        $region21: #{tpu_custom_call.1} parent=11 // pred_check
          %p281 = pneg %p108
        $region22: #{tpu_custom_call.1} parent=11 // pred_check_branch
          %283 = sbr.rel (%p281) target = $region24
        $region23: #{tpu_custom_call.1} parent=11 // pred_region
          _
        $region24: #{tpu_custom_call.1} parent=11 // pred_fallthru
          _
        // Predicated region
        $region25: #{tpu_custom_call.1} parent=11 // pred_check
          %p284 = pneg %p129
        $region26: #{tpu_custom_call.1} parent=11 // pred_check_branch
          %286 = sbr.rel (%p284) target = $region28
        $region27: #{tpu_custom_call.1} parent=11 // pred_region
          _
        $region28: #{tpu_custom_call.1} parent=11 // pred_fallthru
          _
        // Predicated region
        $region29: #{tpu_custom_call.1} parent=11 // pred_check
          %p287 = pneg %p150
        $region30: #{tpu_custom_call.1} parent=11 // pred_check_branch
          %289 = sbr.rel (%p287) target = $region32
        $region31: #{tpu_custom_call.1} parent=11 // pred_region
          _
        $region32: #{tpu_custom_call.1} parent=11 // pred_fallthru
          _
        // Predicated region
        $region33: #{tpu_custom_call.1} parent=11 // pred_check
          %p290 = pneg %p171
        $region34: #{tpu_custom_call.1} parent=11 // pred_check_branch
          %292 = sbr.rel (%p290) target = $region36
        $region35: #{tpu_custom_call.1} parent=11 // pred_region
          _
        $region36: #{tpu_custom_call.1} parent=11 // pred_fallthru
          _
        // Predicated region
        $region37: #{tpu_custom_call.1} parent=11 // pred_check
          %p293 = pneg %p192
        $region38: #{tpu_custom_call.1} parent=11 // pred_check_branch
          %295 = sbr.rel (%p293) target = $region40
        $region39: #{tpu_custom_call.1} parent=11 // pred_region
          _
        $region40: #{tpu_custom_call.1} parent=11 // pred_fallthru
          _
        // Predicated region
        $region41: #{tpu_custom_call.1} parent=11 // pred_check
          %p296 = pneg %p213
        $region42: #{tpu_custom_call.1} parent=11 // pred_check_branch
          %298 = sbr.rel (%p296) target = $region44
        $region43: #{tpu_custom_call.1} parent=11 // pred_region
          _
        $region44: #{tpu_custom_call.1} parent=11 // pred_fallthru
          _
        // Predicated region
        $region45: #{tpu_custom_call.1} parent=11 // pred_check
          %p299 = pneg %p234
        $region46: #{tpu_custom_call.1} parent=11 // pred_check_branch
          %301 = sbr.rel (%p299) target = $region48
        $region47: #{tpu_custom_call.1} parent=11 // pred_region
          _
        $region48: #{tpu_custom_call.1} parent=11 // pred_fallthru
          _
      $region12: #{tpu_custom_call.1} parent=5 // pred_fallthru
        _
      %p302 = scmp.lt.s32.totalorder %s19, 2
      // Predicated region
      $region49: #{tpu_custom_call.1} parent=5 // pred_check
        %p303 = pneg %p302
      $region50: #{tpu_custom_call.1} parent=5 // pred_check_branch
        %305 = sbr.rel (%p303) target = $region52
      $region51: #{tpu_custom_call.1} parent=5 // pred_region
        // Predicated region
        $region53: #{tpu_custom_call.1} parent=51 // pred_check
          %p306 = pneg %p39
        $region54: #{tpu_custom_call.1} parent=51 // pred_check_branch
          %308 = sbr.rel (%p306) target = $region56
        $region55: #{tpu_custom_call.1} parent=51 // pred_region
          %p309 = scmp.lt.s32.totalorder %s19, 1
          %s310 = scalar_select %p309, %s19, 1
          %s311 = smul.addr %s310, 2
          %s312 = smul.addr %s311, 4
          %s313 = scalar_lea.vmem %s0, %s312
        $region56: #{tpu_custom_call.1} parent=51 // pred_fallthru
          _
      $region52: #{tpu_custom_call.1} parent=5 // pred_fallthru
        _
      %p314 = scmp.le.s32.totalorder 1, %s19
      %p315 = scmp.lt.s32.totalorder %s19, 3
      %p316 = pnand %p314, %p315
      %p317 = pneg %p316
      // Predicated region
      $region57: #{tpu_custom_call.1} parent=5 // pred_check
        _
      $region58: #{tpu_custom_call.1} parent=5 // pred_check_branch
        %319 = sbr.rel (%p316) target = $region60
      $region59: #{tpu_custom_call.1} parent=5 // pred_region
        %s320 = ssub.s32 %s19, 1
        %p321 = scmp.lt.s32.totalorder %s24, 1
        %s322 = scalar_select %p321, %s24, 1
        %s323 = smul.addr %s322, 2
        %s324 = smul.addr %s323, 4
        %s325 = scalar_lea.vmem %s0, %s324
        %p326 = pneg %p45
        %p327 = pneg %p42
        %p328 = pneg %p66
        %p329 = pneg %p63
        %p330 = pneg %p87
        %p331 = pneg %p84
        %p332 = pneg %p108
        %p333 = pneg %p105
        %p334 = pneg %p129
        %p335 = pneg %p126
        %p336 = pneg %p150
        %p337 = pneg %p147
        %p338 = pneg %p171
        %p339 = pneg %p168
        %p340 = pneg %p192
        %p341 = pneg %p189
        %p342 = pneg %p213
        %p343 = pneg %p210
        %p344 = pneg %p234
        %p345 = pneg %p231
        %p346 = pneg %p260
        %p347 = pneg %p257
        %s348 = sand.u32 %s247, 1
        %s349 = scalar_lea.sflag [#allocation3], %s348
        %s350 = sand.u32 %s247, 1
        %s351 = smul.addr %s350, 8
        %s352 = scalar_lea.vmem [#allocation2], %s351
        %p353 = scmp.lt.s32.totalorder %s24, 1
        %s354 = scalar_select %p353, %s24, 1
        %s355 = smul.addr %s354, 2
        %s356 = smul.addr %s355, 4
        %s357 = scalar_lea.vmem %s0, %s356
        %v358 = vld [vmem:[%s357] sm:$0xff]
        %v359 = vld [vmem:[%s7] sm:$0xff]
        %v360 = vld [vmem:[%s7 + $0x8] sm:$0xff]
        %v361 = vld [vmem:[%s7 + $0x10] sm:$0xff]
        %v362 = vld [vmem:[%s7 + $0x18] sm:$0xff]
        %v363 = vld [vmem:[%s7 + $0x20] sm:$0xff]
        %v364 = vld [vmem:[%s7 + $0x28] sm:$0xff]
        %v365 = vld [vmem:[%s7 + $0x30] sm:$0xff]
        %v366 = vld [vmem:[%s7 + $0x38] sm:$0xff]
        %v367 = vld [vmem:[%s7 + $0x40] sm:$0xff]
        %v368 = vld [vmem:[%s7 + $0x48] sm:$0xff]
        %v369 = vld [vmem:[%s7 + $0x50] sm:$0xff]
        %v370 = vld [vmem:[%s7 + $0x58] sm:$0xff]
        %v371 = vld [vmem:[%s7 + $0x60] sm:$0xff]
        %v372 = vld [vmem:[%s7 + $0x68] sm:$0xff]
        %v373 = vld [vmem:[%s7 + $0x70] sm:$0xff]
        %v374 = vld [vmem:[%s7 + $0x78] sm:$0xff]
        %v375 = vld [vmem:[%s7 + $0x80] sm:$0xff]
        %v376 = vld [vmem:[%s7 + $0x88] sm:$0xff]
        %v377 = vld [vmem:[%s7 + $0x90] sm:$0xff]
        %v378 = vld [vmem:[%s7 + $0x98] sm:$0xff]
        %v379 = vld [vmem:[%s7 + $0xa0] sm:$0xff]
        %v380 = vld [vmem:[%s7 + $0xa8] sm:$0xff]
        %v381 = vld [vmem:[%s7 + $0xb0] sm:$0xff]
        %v382 = vld [vmem:[%s7 + $0xb8] sm:$0xff]
        %v383 = vld [vmem:[%s7 + $0xc0] sm:$0xff]
        %v384 = vld [vmem:[%s7 + $0xc8] sm:$0xff]
        %v385 = vld [vmem:[%s7 + $0xd0] sm:$0xff]
        %v386 = vld [vmem:[%s7 + $0xd8] sm:$0xff]
        %v387 = vld [vmem:[%s7 + $0xe0] sm:$0xff]
        %v388 = vld [vmem:[%s7 + $0xe8] sm:$0xff]
        %v389 = vld [vmem:[%s7 + $0xf0] sm:$0xff]
        %v390 = vld [vmem:[%s7 + $0xf8] sm:$0xff]
        %v392 = vcombine.high %v358, %v358
        %394 = vmatprep.subr.mxu0 0.0
        %395 = vmatpush1.msra.mxu0 %v359
        %396 = vmatprep.subr.mxu0 0.0
        %397 = vmatpush1.msra.mxu0 %v360
        %398 = vmatprep.subr.mxu0 0.0
        %399 = vmatpush1.msra.mxu0 %v361
        %400 = vmatprep.subr.mxu0 0.0
        %401 = vmatpush1.msra.mxu0 %v362
        %402 = vmatprep.subr.mxu0 0.0
        %403 = vmatpush1.msra.mxu0 %v363
        %404 = vmatprep.subr.mxu0 0.0
        %405 = vmatpush1.msra.mxu0 %v364
        %406 = vmatprep.subr.mxu0 0.0
        %407 = vmatpush1.msra.mxu0 %v365
        %408 = vmatprep.subr.mxu0 0.0
        %409 = vmatpush1.msra.mxu0 %v366
        %410 = vmatprep.subr.mxu0 0.0
        %411 = vmatpush1.msra.mxu0 %v367
        %412 = vmatprep.subr.mxu0 0.0
        %413 = vmatpush1.msra.mxu0 %v368
        %414 = vmatprep.subr.mxu0 0.0
        %415 = vmatpush1.msra.mxu0 %v369
        %416 = vmatprep.subr.mxu0 0.0
        %417 = vmatpush1.msra.mxu0 %v370
        %418 = vmatprep.subr.mxu0 0.0
        %419 = vmatpush1.msra.mxu0 %v371
        %420 = vmatprep.subr.mxu0 0.0
        %421 = vmatpush1.msra.mxu0 %v372
        %422 = vmatprep.subr.mxu0 0.0
        %423 = vmatpush1.msra.mxu0 %v373
        %424 = vmatprep.subr.mxu0 0.0
        %425 = vmatpush1.msra.mxu0 %v374
        %426 = vmatprep.subr.mxu0 0.0
        %427 = vmatpush1.msra.mxu0 %v375
        %428 = vmatprep.subr.mxu0 0.0
        %429 = vmatpush1.msra.mxu0 %v376
        %430 = vmatprep.subr.mxu0 0.0
        %431 = vmatpush1.msra.mxu0 %v377
        %432 = vmatprep.subr.mxu0 0.0
        %433 = vmatpush1.msra.mxu0 %v378
        %434 = vmatprep.subr.mxu0 0.0
        %435 = vmatpush1.msra.mxu0 %v379
        %436 = vmatprep.subr.mxu0 0.0
        %437 = vmatpush1.msra.mxu0 %v380
        %438 = vmatprep.subr.mxu0 0.0
        %439 = vmatpush1.msra.mxu0 %v381
        %440 = vmatprep.subr.mxu0 0.0
        %441 = vmatpush1.msra.mxu0 %v382
        %442 = vmatprep.subr.mxu0 0.0
        %443 = vmatpush1.msra.mxu0 %v383
        %444 = vmatprep.subr.mxu0 0.0
        %445 = vmatpush1.msra.mxu0 %v384
        %446 = vmatprep.subr.mxu0 0.0
        %447 = vmatpush1.msra.mxu0 %v385
        %448 = vmatprep.subr.mxu0 0.0
        %449 = vmatpush1.msra.mxu0 %v386
        %450 = vmatprep.subr.mxu0 0.0
        %451 = vmatpush1.msra.mxu0 %v387
        %452 = vmatprep.subr.mxu0 0.0
        %453 = vmatpush1.msra.mxu0 %v388
        %454 = vmatprep.subr.mxu0 0.0
        %455 = vmatpush1.msra.mxu0 %v389
        %456 = vmatprep.subr.mxu0 0.0
        %457 = vmatpush1.msra.mxu0 %v390
        %458 = vmatprep.mubr.f32.mxu0 %v392
        %459 = vmatmul.mubr.f32.gmra.mrb[0].mxu0 %v358
        %v460 = vpop.f32.mrb[0].mxu0
        %v461 = vadd.f32 0.0, %v460
        %v462 = vpop.f32.mrb[0].mxu0
        %463 = vdwg.mxu0
        %v464 = vld [vmem:[%s1] sm:$0xff]
        %v465 = vld [vmem:[%s2] sm:$0xff]
        %467 = vset.pattern.permute.xlu0 0
        %468 = vperm.xlu0 %467, %v465
        %v469 = vpop.permute.xlu0 %468
        %vm471 = vcmask 31744
        %v473 = vsel %vm471, %v464, 0
        %vm475 = vcmask 1043456
        %v477 = vsel %vm475, %v461, 0
        %479 = vmatprep.subr.mxu0 0.0
        %480 = vmatpush1.msra.mxu0 %v477
        %481 = vmatprep.subr.mxu0 0.0
        %482 = vmatpush1.msra.mxu0 0.0
        %483 = vmatprep.subr.mxu0 0.0
        %484 = vmatpush1.msra.mxu0 0.0
        %485 = vmatprep.subr.mxu0 0.0
        %486 = vmatpush1.msra.mxu0 0.0
        %487 = vmatprep.subr.mxu0 0.0
        %488 = vmatpush1.msra.mxu0 0.0
        %489 = vmatprep.subr.mxu0 0.0
        %490 = vmatpush1.msra.mxu0 0.0
        %491 = vmatprep.subr.mxu0 0.0
        %492 = vmatpush1.msra.mxu0 0.0
        %493 = vmatprep.subr.mxu0 0.0
        %494 = vmatpush1.msra.mxu0 0.0
        %495 = vmatprep.subr.mxu0 0.0
        %496 = vmatpush1.msra.mxu0 0.0
        %497 = vmatprep.subr.mxu0 0.0
        %498 = vmatpush1.msra.mxu0 0.0
        %499 = vmatprep.subr.mxu0 0.0
        %500 = vmatpush1.msra.mxu0 0.0
        %501 = vmatprep.subr.mxu0 0.0
        %502 = vmatpush1.msra.mxu0 0.0
        %503 = vmatprep.subr.mxu0 0.0
        %504 = vmatpush1.msra.mxu0 0.0
        %505 = vmatprep.subr.mxu0 0.0
        %506 = vmatpush1.msra.mxu0 0.0
        %507 = vmatprep.subr.mxu0 0.0
        %508 = vmatpush1.msra.mxu0 0.0
        %509 = vmatprep.subr.mxu0 0.0
        %510 = vmatpush1.msra.mxu0 0.0
        %511 = vmatprep.subr.mxu0 0.0
        %512 = vmatpush1.msra.mxu0 0.0
        %513 = vmatprep.subr.mxu0 0.0
        %514 = vmatpush1.msra.mxu0 0.0
        %515 = vmatprep.subr.mxu0 0.0
        %516 = vmatpush1.msra.mxu0 0.0
        %517 = vmatprep.subr.mxu0 0.0
        %518 = vmatpush1.msra.mxu0 0.0
        %519 = vmatprep.subr.mxu0 0.0
        %520 = vmatpush1.msra.mxu0 0.0
        %521 = vmatprep.subr.mxu0 0.0
        %522 = vmatpush1.msra.mxu0 0.0
        %523 = vmatprep.subr.mxu0 0.0
        %524 = vmatpush1.msra.mxu0 0.0
        %525 = vmatprep.subr.mxu0 0.0
        %526 = vmatpush1.msra.mxu0 0.0
        %527 = vmatprep.subr.mxu0 0.0
        %528 = vmatpush1.msra.mxu0 0.0
        %529 = vmatprep.subr.mxu0 0.0
        %530 = vmatpush1.msra.mxu0 0.0
        %531 = vmatprep.subr.mxu0 0.0
        %532 = vmatpush1.msra.mxu0 0.0
        %533 = vmatprep.subr.mxu0 0.0
        %534 = vmatpush1.msra.mxu0 0.0
        %535 = vmatprep.subr.mxu0 0.0
        %536 = vmatpush1.msra.mxu0 0.0
        %537 = vmatprep.subr.mxu0 0.0
        %538 = vmatpush1.msra.mxu0 0.0
        %539 = vmatprep.subr.mxu0 0.0
        %540 = vmatpush1.msra.mxu0 0.0
        %541 = vmatprep.subr.mxu0 0.0
        %542 = vmatpush1.msra.mxu0 0.0
        %543 = vmatprep.mubr.f32.mxu0 0.0
        %544 = vmatmul.mubr.f32.gmra.mrb[0].mxu0 %v473
        %v545 = vpop.f32.mrb[0].mxu0
        %v546 = vadd.f32 %v469, %v545
        %v547 = vpop.f32.mrb[0].mxu0
        %548 = vdwg.mxu0
        %v549 = vadd.f32 %v546, 3.0
        %v550 = vmax.f32 %v549, 0.0
        %v551 = vmin.f32 %v550, 6.0
        %v552 = vmul.f32 %v551, 0.16666667
        %v553 = vmul.f32 %v546, %v552
        %v554 = vld [vmem:[%s3] sm:$0xf]
        %v555 = vld [vmem:[%s4] sm:$0xf]
        %557 = vset.pattern.permute.xlu0 0
        %558 = vperm.xlu0 %557, %v555
        %v559 = vpop.permute.xlu0 %558
        %vm561 = vcmask 64512
        %v563 = vsel %vm561, %v554, 0
        %565 = vmatprep.subr.mxu0 0.0
        %566 = vmatpush1.msra.mxu0 %v553
        %567 = vmatprep.subr.mxu0 0.0
        %568 = vmatpush1.msra.mxu0 0.0
        %569 = vmatprep.subr.mxu0 0.0
        %570 = vmatpush1.msra.mxu0 0.0
        %571 = vmatprep.subr.mxu0 0.0
        %572 = vmatpush1.msra.mxu0 0.0
        %573 = vmatprep.subr.mxu0 0.0
        %574 = vmatpush1.msra.mxu0 0.0
        %575 = vmatprep.subr.mxu0 0.0
        %576 = vmatpush1.msra.mxu0 0.0
        %577 = vmatprep.subr.mxu0 0.0
        %578 = vmatpush1.msra.mxu0 0.0
        %579 = vmatprep.subr.mxu0 0.0
        %580 = vmatpush1.msra.mxu0 0.0
        %581 = vmatprep.subr.mxu0 0.0
        %582 = vmatpush1.msra.mxu0 0.0
        %583 = vmatprep.subr.mxu0 0.0
        %584 = vmatpush1.msra.mxu0 0.0
        %585 = vmatprep.subr.mxu0 0.0
        %586 = vmatpush1.msra.mxu0 0.0
        %587 = vmatprep.subr.mxu0 0.0
        %588 = vmatpush1.msra.mxu0 0.0
        %589 = vmatprep.subr.mxu0 0.0
        %590 = vmatpush1.msra.mxu0 0.0
        %591 = vmatprep.subr.mxu0 0.0
        %592 = vmatpush1.msra.mxu0 0.0
        %593 = vmatprep.subr.mxu0 0.0
        %594 = vmatpush1.msra.mxu0 0.0
        %595 = vmatprep.subr.mxu0 0.0
        %596 = vmatpush1.msra.mxu0 0.0
        %597 = vmatprep.subr.mxu0 0.0
        %598 = vmatpush1.msra.mxu0 0.0
        %599 = vmatprep.subr.mxu0 0.0
        %600 = vmatpush1.msra.mxu0 0.0
        %601 = vmatprep.subr.mxu0 0.0
        %602 = vmatpush1.msra.mxu0 0.0
        %603 = vmatprep.subr.mxu0 0.0
        %604 = vmatpush1.msra.mxu0 0.0
        %605 = vmatprep.subr.mxu0 0.0
        %606 = vmatpush1.msra.mxu0 0.0
        %607 = vmatprep.subr.mxu0 0.0
        %608 = vmatpush1.msra.mxu0 0.0
        %609 = vmatprep.subr.mxu0 0.0
        %610 = vmatpush1.msra.mxu0 0.0
        %611 = vmatprep.subr.mxu0 0.0
        %612 = vmatpush1.msra.mxu0 0.0
        %613 = vmatprep.subr.mxu0 0.0
        %614 = vmatpush1.msra.mxu0 0.0
        %615 = vmatprep.subr.mxu0 0.0
        %616 = vmatpush1.msra.mxu0 0.0
        %617 = vmatprep.subr.mxu0 0.0
        %618 = vmatpush1.msra.mxu0 0.0
        %619 = vmatprep.subr.mxu0 0.0
        %620 = vmatpush1.msra.mxu0 0.0
        %621 = vmatprep.subr.mxu0 0.0
        %622 = vmatpush1.msra.mxu0 0.0
        %623 = vmatprep.subr.mxu0 0.0
        %624 = vmatpush1.msra.mxu0 0.0
        %625 = vmatprep.subr.mxu0 0.0
        %626 = vmatpush1.msra.mxu0 0.0
        %627 = vmatprep.subr.mxu0 0.0
        %628 = vmatpush1.msra.mxu0 0.0
        %629 = vmatprep.mubr.f32.mxu0 0.0
        %630 = vmatmul.mubr.f32.gmra.mrb[0].mxu0 %v563
        %v631 = vpop.f32.mrb[0].mxu0
        %v632 = vadd.f32 %v559, %v631
        %v633 = vpop.f32.mrb[0].mxu0
        %634 = vdwg.mxu0
        %v635 = vxor.u32 %v632, 2147483648
        %v636 = vmul.f32 %v635, 1.442695
        %v637 = vpow.pop %v636
        %v638 = vadd.f32 %v637, 1.0
        %v639 = vrcp.pop %v638
        %v640 = vmul.f32 1.0, %v639
        %v641 = vld [vmem:[%s5] sm:$0xf]
        %v642 = vld [vmem:[%s6] sm:$0xf]
        %644 = vset.pattern.permute.xlu0 0
        %645 = vperm.xlu0 %644, %v642
        %v646 = vpop.permute.xlu0 %645
        %649 = vrot.lane.b32.xlu0 %v553, 112
        %v650 = vpop.permute.xlu0 %649
        %v653 = vsel %vm561, %v641, 0
        %655 = vmatprep.subr.mxu0 0.0
        %656 = vmatpush1.msra.mxu0 %v650
        %657 = vmatprep.subr.mxu0 0.0
        %658 = vmatpush1.msra.mxu0 0.0
        %659 = vmatprep.subr.mxu0 0.0
        %660 = vmatpush1.msra.mxu0 0.0
        %661 = vmatprep.subr.mxu0 0.0
        %662 = vmatpush1.msra.mxu0 0.0
        %663 = vmatprep.subr.mxu0 0.0
        %664 = vmatpush1.msra.mxu0 0.0
        %665 = vmatprep.subr.mxu0 0.0
        %666 = vmatpush1.msra.mxu0 0.0
        %667 = vmatprep.subr.mxu0 0.0
        %668 = vmatpush1.msra.mxu0 0.0
        %669 = vmatprep.subr.mxu0 0.0
        %670 = vmatpush1.msra.mxu0 0.0
        %671 = vmatprep.subr.mxu0 0.0
        %672 = vmatpush1.msra.mxu0 0.0
        %673 = vmatprep.subr.mxu0 0.0
        %674 = vmatpush1.msra.mxu0 0.0
        %675 = vmatprep.subr.mxu0 0.0
        %676 = vmatpush1.msra.mxu0 0.0
        %677 = vmatprep.subr.mxu0 0.0
        %678 = vmatpush1.msra.mxu0 0.0
        %679 = vmatprep.subr.mxu0 0.0
        %680 = vmatpush1.msra.mxu0 0.0
        %681 = vmatprep.subr.mxu0 0.0
        %682 = vmatpush1.msra.mxu0 0.0
        %683 = vmatprep.subr.mxu0 0.0
        %684 = vmatpush1.msra.mxu0 0.0
        %685 = vmatprep.subr.mxu0 0.0
        %686 = vmatpush1.msra.mxu0 0.0
        %687 = vmatprep.subr.mxu0 0.0
        %688 = vmatpush1.msra.mxu0 0.0
        %689 = vmatprep.subr.mxu0 0.0
        %690 = vmatpush1.msra.mxu0 0.0
        %691 = vmatprep.subr.mxu0 0.0
        %692 = vmatpush1.msra.mxu0 0.0
        %693 = vmatprep.subr.mxu0 0.0
        %694 = vmatpush1.msra.mxu0 0.0
        %695 = vmatprep.subr.mxu0 0.0
        %696 = vmatpush1.msra.mxu0 0.0
        %697 = vmatprep.subr.mxu0 0.0
        %698 = vmatpush1.msra.mxu0 0.0
        %699 = vmatprep.subr.mxu0 0.0
        %700 = vmatpush1.msra.mxu0 0.0
        %701 = vmatprep.subr.mxu0 0.0
        %702 = vmatpush1.msra.mxu0 0.0
        %703 = vmatprep.subr.mxu0 0.0
        %704 = vmatpush1.msra.mxu0 0.0
        %705 = vmatprep.subr.mxu0 0.0
        %706 = vmatpush1.msra.mxu0 0.0
        %707 = vmatprep.subr.mxu0 0.0
        %708 = vmatpush1.msra.mxu0 0.0
        %709 = vmatprep.subr.mxu0 0.0
        %710 = vmatpush1.msra.mxu0 0.0
        %711 = vmatprep.subr.mxu0 0.0
        %712 = vmatpush1.msra.mxu0 0.0
        %713 = vmatprep.subr.mxu0 0.0
        %714 = vmatpush1.msra.mxu0 0.0
        %715 = vmatprep.subr.mxu0 0.0
        %716 = vmatpush1.msra.mxu0 0.0
        %717 = vmatprep.subr.mxu0 0.0
        %718 = vmatpush1.msra.mxu0 0.0
        %719 = vmatprep.mubr.f32.mxu0 0.0
        %720 = vmatmul.mubr.f32.gmra.mrb[0].mxu0 %v653
        %v721 = vpop.f32.mrb[0].mxu0
        %v722 = vadd.f32 %v646, %v721
        %v723 = vpop.f32.mrb[0].mxu0
        %724 = vdwg.mxu0
        %v725 = vxor.u32 %v722, 2147483648
        %v726 = vmul.f32 %v725, 1.442695
        %v727 = vpow.pop %v726
        %v728 = vadd.f32 %v727, 1.0
        %v729 = vrcp.pop %v728
        %v730 = vmul.f32 1.0, %v729
        %v731 = vld [vmem:[%s8] sm:$0xff]
        %v732 = vld [vmem:[%s8 + $0x8] sm:$0xff]
        %v733 = vld [vmem:[%s8 + $0x10] sm:$0xff]
        %v734 = vld [vmem:[%s8 + $0x18] sm:$0xff]
        %vm735 = vcmask 130048
        %v737 = vsel %vm735, %v640, 0
        %739 = vmatprep.subr.mxu0 %v732
        %740 = vmatpush1.msra.mxu0 %v731
        %741 = vmatprep.subr.mxu0 %v734
        %742 = vmatpush1.msra.mxu0 %v733
        %743 = vmatprep.subr.mxu0 0.0
        %744 = vmatpush1.msra.mxu0 0.0
        %745 = vmatprep.subr.mxu0 0.0
        %746 = vmatpush1.msra.mxu0 0.0
        %747 = vmatprep.subr.mxu0 0.0
        %748 = vmatpush1.msra.mxu0 0.0
        %749 = vmatprep.subr.mxu0 0.0
        %750 = vmatpush1.msra.mxu0 0.0
        %751 = vmatprep.subr.mxu0 0.0
        %752 = vmatpush1.msra.mxu0 0.0
        %753 = vmatprep.subr.mxu0 0.0
        %754 = vmatpush1.msra.mxu0 0.0
        %755 = vmatprep.subr.mxu0 0.0
        %756 = vmatpush1.msra.mxu0 0.0
        %757 = vmatprep.subr.mxu0 0.0
        %758 = vmatpush1.msra.mxu0 0.0
        %759 = vmatprep.subr.mxu0 0.0
        %760 = vmatpush1.msra.mxu0 0.0
        %761 = vmatprep.subr.mxu0 0.0
        %762 = vmatpush1.msra.mxu0 0.0
        %763 = vmatprep.subr.mxu0 0.0
        %764 = vmatpush1.msra.mxu0 0.0
        %765 = vmatprep.subr.mxu0 0.0
        %766 = vmatpush1.msra.mxu0 0.0
        %767 = vmatprep.subr.mxu0 0.0
        %768 = vmatpush1.msra.mxu0 0.0
        %769 = vmatprep.subr.mxu0 0.0
        %770 = vmatpush1.msra.mxu0 0.0
        %771 = vmatprep.subr.mxu0 0.0
        %772 = vmatpush1.msra.mxu0 0.0
        %773 = vmatprep.subr.mxu0 0.0
        %774 = vmatpush1.msra.mxu0 0.0
        %775 = vmatprep.subr.mxu0 0.0
        %776 = vmatpush1.msra.mxu0 0.0
        %777 = vmatprep.subr.mxu0 0.0
        %778 = vmatpush1.msra.mxu0 0.0
        %779 = vmatprep.subr.mxu0 0.0
        %780 = vmatpush1.msra.mxu0 0.0
        %781 = vmatprep.subr.mxu0 0.0
        %782 = vmatpush1.msra.mxu0 0.0
        %783 = vmatprep.subr.mxu0 0.0
        %784 = vmatpush1.msra.mxu0 0.0
        %785 = vmatprep.subr.mxu0 0.0
        %786 = vmatpush1.msra.mxu0 0.0
        %787 = vmatprep.subr.mxu0 0.0
        %788 = vmatpush1.msra.mxu0 0.0
        %789 = vmatprep.subr.mxu0 0.0
        %790 = vmatpush1.msra.mxu0 0.0
        %791 = vmatprep.subr.mxu0 0.0
        %792 = vmatpush1.msra.mxu0 0.0
        %793 = vmatprep.subr.mxu0 0.0
        %794 = vmatpush1.msra.mxu0 0.0
        %795 = vmatprep.subr.mxu0 0.0
        %796 = vmatpush1.msra.mxu0 0.0
        %797 = vmatprep.subr.mxu0 0.0
        %798 = vmatpush1.msra.mxu0 0.0
        %799 = vmatprep.subr.mxu0 0.0
        %800 = vmatpush1.msra.mxu0 0.0
        %801 = vmatprep.subr.mxu0 0.0
        %802 = vmatpush1.msra.mxu0 0.0
        %803 = vmatprep.mubr.f32.mxu0 0.0
        %804 = vmatmul.mubr.f32.gmra.mrb[0].mxu0 %v737
        %v805 = vpop.f32.mrb[0].mxu0
        %v806 = vadd.f32 0.0, %v805
        %v807 = vpop.f32.mrb[0].mxu0
        %v808 = vadd.f32 0.0, %v807
        %809 = vdwg.mxu0
        %v810 = vld [vmem:[%s9] sm:$0xff]
        %v811 = vld [vmem:[%s9 + $0x8] sm:$0xff]
        %v812 = vld [vmem:[%s9 + $0x10] sm:$0xff]
        %v813 = vld [vmem:[%s9 + $0x18] sm:$0xff]
        %v815 = vsel %vm735, %v730, 0
        %817 = vmatprep.subr.mxu0 %v811
        %818 = vmatpush1.msra.mxu0 %v810
        %819 = vmatprep.subr.mxu0 %v813
        %820 = vmatpush1.msra.mxu0 %v812
        %821 = vmatprep.subr.mxu0 0.0
        %822 = vmatpush1.msra.mxu0 0.0
        %823 = vmatprep.subr.mxu0 0.0
        %824 = vmatpush1.msra.mxu0 0.0
        %825 = vmatprep.subr.mxu0 0.0
        %826 = vmatpush1.msra.mxu0 0.0
        %827 = vmatprep.subr.mxu0 0.0
        %828 = vmatpush1.msra.mxu0 0.0
        %829 = vmatprep.subr.mxu0 0.0
        %830 = vmatpush1.msra.mxu0 0.0
        %831 = vmatprep.subr.mxu0 0.0
        %832 = vmatpush1.msra.mxu0 0.0
        %833 = vmatprep.subr.mxu0 0.0
        %834 = vmatpush1.msra.mxu0 0.0
        %835 = vmatprep.subr.mxu0 0.0
        %836 = vmatpush1.msra.mxu0 0.0
        %837 = vmatprep.subr.mxu0 0.0
        %838 = vmatpush1.msra.mxu0 0.0
        %839 = vmatprep.subr.mxu0 0.0
        %840 = vmatpush1.msra.mxu0 0.0
        %841 = vmatprep.subr.mxu0 0.0
        %842 = vmatpush1.msra.mxu0 0.0
        %843 = vmatprep.subr.mxu0 0.0
        %844 = vmatpush1.msra.mxu0 0.0
        %845 = vmatprep.subr.mxu0 0.0
        %846 = vmatpush1.msra.mxu0 0.0
        %847 = vmatprep.subr.mxu0 0.0
        %848 = vmatpush1.msra.mxu0 0.0
        %849 = vmatprep.subr.mxu0 0.0
        %850 = vmatpush1.msra.mxu0 0.0
        %851 = vmatprep.subr.mxu0 0.0
        %852 = vmatpush1.msra.mxu0 0.0
        %853 = vmatprep.subr.mxu0 0.0
        %854 = vmatpush1.msra.mxu0 0.0
        %855 = vmatprep.subr.mxu0 0.0
        %856 = vmatpush1.msra.mxu0 0.0
        %857 = vmatprep.subr.mxu0 0.0
        %858 = vmatpush1.msra.mxu0 0.0
        %859 = vmatprep.subr.mxu0 0.0
        %860 = vmatpush1.msra.mxu0 0.0
        %861 = vmatprep.subr.mxu0 0.0
        %862 = vmatpush1.msra.mxu0 0.0
        %863 = vmatprep.subr.mxu0 0.0
        %864 = vmatpush1.msra.mxu0 0.0
        %865 = vmatprep.subr.mxu0 0.0
        %866 = vmatpush1.msra.mxu0 0.0
        %867 = vmatprep.subr.mxu0 0.0
        %868 = vmatpush1.msra.mxu0 0.0
        %869 = vmatprep.subr.mxu0 0.0
        %870 = vmatpush1.msra.mxu0 0.0
        %871 = vmatprep.subr.mxu0 0.0
        %872 = vmatpush1.msra.mxu0 0.0
        %873 = vmatprep.subr.mxu0 0.0
        %874 = vmatpush1.msra.mxu0 0.0
        %875 = vmatprep.subr.mxu0 0.0
        %876 = vmatpush1.msra.mxu0 0.0
        %877 = vmatprep.subr.mxu0 0.0
        %878 = vmatpush1.msra.mxu0 0.0
        %879 = vmatprep.subr.mxu0 0.0
        %880 = vmatpush1.msra.mxu0 0.0
        %881 = vmatprep.mubr.f32.mxu0 0.0
        %882 = vmatmul.mubr.f32.gmra.mrb[0].mxu0 %v815
        %v883 = vpop.f32.mrb[0].mxu0
        %v884 = vadd.f32 0.0, %v883
        %v885 = vpop.f32.mrb[0].mxu0
        %v886 = vadd.f32 0.0, %v885
        %887 = vdwg.mxu0
        %v888 = vmul.f32 %v806, %v884
        %v889 = vmul.f32 %v808, %v886
        %v892 = vcombine.low %v888, %v889
        %v894 = vmul.f32 %v358, %v892
        %895 = vst [vmem:[%s352] sm:$0xff] %v894
        %s896 = sand.u32 %s247, 1
        %s897 = scalar_lea.sflag [#allocation3], %s896
        %s898 = sand.u32 %s247, 1
        %s899 = smul.addr %s898, 8
        %s900 = scalar_lea.vmem [#allocation2], %s899
        // Predicated region
        $region61: #{tpu_custom_call.1} parent=59 // pred_check
          %p901 = pneg %p257
        $region62: #{tpu_custom_call.1} parent=59 // pred_check_branch
          %903 = sbr.rel (%p901) target = $region64
        $region63: #{tpu_custom_call.1} parent=59 // pred_region
          %s905 = ssub.s32 128, 128
          %906 = vsyncadd %s897, %s905
          %s907 = smul.addr %s24, 2
          %s908 = smul.addr %s907, 64
          %s909 = scalar_lea.hbm %s10, %s908
          %s911 = sshll.u32 %s900, 4
          %s912 = int_to_ptr.vmem [resolvable:$true] %s911
          %914 = dma.vmem_to_hbm [thread:$0]  %s912, 128, %s909, %s897
        $region64: #{tpu_custom_call.1} parent=59 // pred_fallthru
          _
      $region60: #{tpu_custom_call.1} parent=5 // pred_fallthru
        _
      %p915 = scmp.le.s32.totalorder 2, %s19
      // Predicated region
      $region65: #{tpu_custom_call.1} parent=5 // pred_check
        %p916 = pneg %p915
      $region66: #{tpu_custom_call.1} parent=5 // pred_check_branch
        %918 = sbr.rel (%p916) target = $region68
      $region67: #{tpu_custom_call.1} parent=5 // pred_region
        %s919 = ssub.s32 %s19, 2
        // Predicated region
        $region69: #{tpu_custom_call.1} parent=67 // pred_check
          %p920 = pneg %p263
        $region70: #{tpu_custom_call.1} parent=67 // pred_check_branch
          %922 = sbr.rel (%p920) target = $region72
        $region71: #{tpu_custom_call.1} parent=67 // pred_region
          %s923 = sand.u32 %s248, 1
          %s924 = scalar_lea.sflag [#allocation3], %s923
          %s925 = sand.u32 %s248, 1
          %s926 = smul.addr %s925, 8
          %s927 = scalar_lea.vmem [#allocation2], %s926
          %928 = dma.done %s924, 128
        $region72: #{tpu_custom_call.1} parent=67 // pred_fallthru
          _
      $region68: #{tpu_custom_call.1} parent=5 // pred_fallthru
        _
    $region6: #{tpu_custom_call.1} parent=1 // loop_footer
      %s23 = sadd.s32 1, %s19
    $region7: #{tpu_custom_call.1} parent=1 // loop_footer_branch
      %18 = sbr.rel target = $region3
    $region8: #{tpu_custom_call.1} parent=1 // loop_exit
      _
    %929 = vsyncpa [#allocation3], 1
    %s930 = scalar_lea.sflag [#allocation3], 1
    %931 = vsyncpa %s930, 1

</llo_original>
